<compile_context>
chip_gen: v6e
topology: v6e:2x2x1
jax: 0.10.0
libtpu: 0.0.40
codegen_flags: <defaults>
</compile_context>

<pallas_src>
import jax
import jax.numpy as jnp
from jax import lax
from jax.experimental import pallas as pl
from jax.experimental.pallas import tpu as pltpu

BN_EPS = 1e-5
_LANE = 128            # channel / contraction padding target (lane width)
_ROW_TARGET = 2048     # target rows per tile (multi-MB, lane-dense blocks)


def _round_up(x, m):
    return (x + m - 1) // m * m


def _pick_tile_rows(Ho, Wo, row_target=_ROW_TARGET):
    """Largest h-tile TH dividing Ho with TH*Wo a multiple of 128 and <= target.

    Falls back to the whole image (block dims == full dims, always legal).
    """
    best = None
    for th in range(1, Ho + 1):
        if Ho % th:
            continue
        rows = th * Wo
        if rows > row_target:
            break
        if rows % 128 == 0:
            best = th
    return best if best is not None else Ho


# ---------------------------------------------------------------------------
# Phase 1: conv as one im2col matmul per row tile (bf16 MXU operands, f32
# accumulation) + per-tile partial BN statistics.  conv stored as bf16.
# ---------------------------------------------------------------------------
def _conv_stats_kernel(x_ref, w_ref, y_ref, stats_ref):
    """x:(1,TR,Kp) bf16, w:(Kp,Coutp) bf16 -> y:(1,TR,Coutp) bf16,
    stats:(1,1,2,Coutp) f32 = [sum, sum_sq] over the TR rows (f32 accumulated
    before the bf16 downcast of the conv output)."""
    acc = jnp.dot(x_ref[0], w_ref[...], preferred_element_type=jnp.float32)
    # Both stats rows live in one tiny (2, Coutp) block; writeback is ~1 KB/step.
    stats_ref[0, 0, 0:1, :] = jnp.sum(acc, axis=0, keepdims=True)
    stats_ref[0, 0, 1:2, :] = jnp.sum(acc * acc, axis=0, keepdims=True)
    y_ref[0] = acc.astype(y_ref.dtype)


# ---------------------------------------------------------------------------
# Phase 2: y = relu(conv*scale + shift), fused transpose to (Cout, H*W) and
# channel un-padding, so the kernel writes the final NCHW layout directly.
# ---------------------------------------------------------------------------
def _bn_relu_kernel(y_ref, scale_ref, shift_ref, o_ref):
    """y:(1,TR,Coutp) bf16 -> o:(1,Cout,TR) f32."""
    cout = o_ref.shape[1]
    z = jnp.maximum(
        y_ref[0].astype(jnp.float32) * scale_ref[...] + shift_ref[...], 0.0)
    # (TR, Coutp) -> (Coutp, TR) on the XLU, then keep the first Cout rows.
    o_ref[0] = jnp.transpose(z, (1, 0))[0:cout, :]


# ---------------------------------------------------------------------------
# Wrapper: NCHW in / NCHW out, matching the PyTorch module forward.
# ---------------------------------------------------------------------------
def conv_bn_relu(x_nchw, weight_oihw, gamma, beta, *, padding=1):
    N, Cin, H, W = x_nchw.shape
    Cout, Cin_w, KH, KW = weight_oihw.shape
    assert Cin_w == Cin, "groups != 1 not supported"
    # Module defaults: stride=1, dilation=1, groups=1, bias=False.

    Ho = H + 2 * padding - KH + 1
    Wo = W + 2 * padding - KW + 1
    HWo = Ho * Wo
    K = KH * KW * Cin
    Kp = _round_up(K, _LANE)
    Coutp = _round_up(Cout, _LANE)
    TH = _pick_tile_rows(Ho, Wo)
    TR = TH * Wo
    nh = Ho // TH

    # --- layout plumbing (XLA): im2col + channel padding, bf16 MXU operands ---
    x_nhwc = jnp.transpose(x_nchw, (0, 2, 3, 1)).astype(jnp.float32)
    x_pad = jnp.pad(
        x_nhwc, ((0, 0), (padding, padding), (padding, padding), (0, 0)))
    taps = [x_pad[:, kh:kh + Ho, kw:kw + Wo, :]
            for kh in range(KH) for kw in range(KW)]          # order (kh, kw, ci)
    x_col = jnp.concatenate(taps, axis=-1)                    # (N, Ho, Wo, K)
    x_col = jnp.pad(x_col, ((0, 0), (0, 0), (0, 0), (0, Kp - K)))
    x_col = x_col.reshape(N, HWo, Kp).astype(jnp.bfloat16)

    # w_fold[(kh*KW+kw)*Cin + ci, co] = weight[co, ci, kh, kw]
    w_fold = jnp.transpose(weight_oihw, (2, 3, 1, 0)).astype(jnp.float32)
    w_fold = w_fold.reshape(K, Cout)
    w_fold = jnp.pad(w_fold, ((0, Kp - K), (0, Coutp - Cout))).astype(jnp.bfloat16)

    gamma_p = jnp.pad(gamma.astype(jnp.float32), (0, Coutp - Cout))
    beta_p = jnp.pad(beta.astype(jnp.float32), (0, Coutp - Cout))

    cparams = pltpu.CompilerParams(
        dimension_semantics=("parallel", "parallel"),
        vmem_limit_bytes=48 * 1024 * 1024,
    )

    # --- phase 1: conv (one MXU matmul / tile) + per-tile BN partials ---
    y_conv, partial = pl.pallas_call(
        _conv_stats_kernel,
        grid=(N, nh),
        in_specs=[
            pl.BlockSpec((1, TR, Kp), lambda n, h: (n, h, 0)),
            pl.BlockSpec((Kp, Coutp), lambda n, h: (0, 0)),
        ],
        out_specs=[
            pl.BlockSpec((1, TR, Coutp), lambda n, h: (n, h, 0)),
            pl.BlockSpec((1, 1, 2, Coutp), lambda n, h: (n, h, 0, 0)),
        ],
        out_shape=[
            jax.ShapeDtypeStruct((N, HWo, Coutp), jnp.bfloat16),
            jax.ShapeDtypeStruct((N, nh, 2, Coutp), jnp.float32),
        ],
        compiler_params=cparams,
    )(x_col, w_fold)

    # --- global batch statistics (tiny XLA reduction) -> scale / shift ---
    count = N * HWo
    sums = jnp.sum(partial[:, :, 0, :], axis=(0, 1))
    sqs = jnp.sum(partial[:, :, 1, :], axis=(0, 1))
    mean = sums / count
    # Single-pass E[x^2]-E[x]^2 on f32 sums (clamped at 0); fine at these
    # magnitudes — a production BN would combine per-tile Welford partials.
    var = jnp.maximum(sqs / count - mean * mean, 0.0)
    inv_std = lax.rsqrt(var + BN_EPS)
    scale = (gamma_p * inv_std).reshape(1, Coutp)
    shift = (beta_p - mean * gamma_p * inv_std).reshape(1, Coutp)

    # --- phase 2: normalize + ReLU, fused transpose + channel un-padding ---
    out_flat = pl.pallas_call(
        _bn_relu_kernel,
        grid=(N, nh),
        in_specs=[
            pl.BlockSpec((1, TR, Coutp), lambda n, h: (n, h, 0)),
            pl.BlockSpec((1, Coutp), lambda n, h: (0, 0)),
            pl.BlockSpec((1, Coutp), lambda n, h: (0, 0)),
        ],
        out_specs=pl.BlockSpec((1, Cout, TR), lambda n, h: (n, 0, h)),
        out_shape=jax.ShapeDtypeStruct((N, Cout, HWo), jnp.float32),
        compiler_params=cparams,
    )(y_conv, scale, shift)

    return out_flat.reshape(N, Cout, Ho, Wo)


# ---------------------------------------------------------------------------
# Parameter init (matches the module __init__) and pure-JAX reference.
# ---------------------------------------------------------------------------
def init_params(key, in_channels, out_channels, kh=3, kw=3):
    """xavier_uniform conv weight; BN gamma=1, beta=0."""
    fan_in = in_channels * kh * kw
    fan_out = out_channels * kh * kw
    bound = (6.0 / (fan_in + fan_out)) ** 0.5
    weight = jax.random.uniform(
        key, (out_channels, in_channels, kh, kw),
        minval=-bound, maxval=bound, dtype=jnp.float32,
    )
    gamma = jnp.ones((out_channels,), jnp.float32)
    beta = jnp.zeros((out_channels,), jnp.float32)
    return weight, gamma, beta


def reference(x_nchw, weight_oihw, gamma, beta, *, padding=1):
    y = lax.conv_general_dilated(
        x_nchw.astype(jnp.float32), weight_oihw.astype(jnp.float32),
        window_strides=(1, 1), padding=[(padding, padding), (padding, padding)],
        dimension_numbers=("NCHW", "OIHW", "NCHW"),
    )
    mean = jnp.mean(y, axis=(0, 2, 3), keepdims=True)
    var = jnp.mean((y - mean) ** 2, axis=(0, 2, 3), keepdims=True)
    y = (y - mean) * lax.rsqrt(var + BN_EPS)
    y = y * gamma.reshape(1, -1, 1, 1) + beta.reshape(1, -1, 1, 1)
    return jnp.maximum(y, 0.0)


if __name__ == "__main__":
    key = jax.random.PRNGKey(0)
    k_x, k_w = jax.random.split(key)

    N, Cin, Cout, H, W = 2, 4, 8, 16, 16
    x = jax.random.normal(k_x, (N, Cin, H, W), dtype=jnp.float32)
    weight, gamma, beta = init_params(k_w, Cin, Cout)

    # Pre-round inputs to bf16-representable values so the kernel's bf16 MXU
    # operands add no operand rounding; the remaining difference vs the f32
    # reference is the bf16 rounding of the conv intermediate (~2^-9 relative),
    # which the tolerance below covers with margin.
    x = x.astype(jnp.bfloat16).astype(jnp.float32)
    weight = weight.astype(jnp.bfloat16).astype(jnp.float32)

    fn = jax.jit(conv_bn_relu)
    out = jax.block_until_ready(fn(x, weight, gamma, beta))
    ref = jax.block_until_ready(reference(x, weight, gamma, beta))

    assert out.shape == (N, Cout, H, W)
    assert jnp.allclose(out, ref, atol=2e-2, rtol=1e-2), "mismatch vs reference"

    print("KERNEL_OK")
</pallas_src>

<mosaic_0001>
module attributes {stable_mosaic.version = 11 : i64} {
  func.func @_conv_stats_kernel(%arg0: i32, %arg1: i32, %arg2: memref<1x256x128xbf16, #tpu.memory_space<vmem>>, %arg3: memref<128x128xbf16, #tpu.memory_space<vmem>>, %arg4: memref<1x256x128xbf16, #tpu.memory_space<vmem>>, %arg5: memref<1x1x2x128xf32, #tpu.memory_space<vmem>>) attributes {dimension_semantics = [#tpu.dimension_semantics<parallel>, #tpu.dimension_semantics<parallel>], iteration_bounds = array<i64: 2, 1>, scalar_prefetch = 0 : i64, scratch_operands = 0 : i64, tpu.core_type = #tpu.core_type<tc>, window_params = [{transform_indices = @transform_0, window_bounds = array<i64: 1, 256, 128>}, {pipeline_mode = #tpu.pipeline_mode<synchronous>, transform_indices = @transform_1, window_bounds = array<i64: 128, 128>}, {transform_indices = @transform_2, window_bounds = array<i64: 1, 256, 128>}, {transform_indices = @transform_3, window_bounds = array<i64: 1, 1, 2, 128>}]} {
    %c0 = arith.constant 0 : index
    %c0_0 = arith.constant 0 : index
    %c0_1 = arith.constant 0 : index
    %0 = vector.load %arg2[%c0, %c0_0, %c0_1] : memref<1x256x128xbf16, #tpu.memory_space<vmem>>, vector<1x256x128xbf16>
    %1 = vector.shape_cast %0 : vector<1x256x128xbf16> to vector<256x128xbf16>
    %c0_2 = arith.constant 0 : index
    %c0_3 = arith.constant 0 : index
    %2 = vector.load %arg3[%c0_2, %c0_3] : memref<128x128xbf16, #tpu.memory_space<vmem>>, vector<128x128xbf16>
    %cst = arith.constant dense<0.000000e+00> : vector<256x128xf32>
    %3 = tpu.matmul %1, %2, %cst {dimension_numbers = #tpu.dot_dimension_numbers<[1], [0], [0], [1], [0, 0, 1, 1], [], []>} : vector<256x128xbf16>, vector<128x128xbf16>, vector<256x128xf32> -> vector<256x128xf32>
    %cst_4 = arith.constant dense<0.000000e+00> : vector<128xf32>
    %4 = vector.multi_reduction <add>, %3, %cst_4 [0] : vector<256x128xf32> to vector<128xf32>
    %5 = vector.shape_cast %4 : vector<128xf32> to vector<1x128xf32>
    %c0_5 = arith.constant 0 : index
    %c0_6 = arith.constant 0 : index
    %c0_7 = arith.constant 0 : index
    %c0_8 = arith.constant 0 : index
    %6 = vector.load %arg5[%c0_5, %c0_6, %c0_7, %c0_8] : memref<1x1x2x128xf32, #tpu.memory_space<vmem>>, vector<1x1x1x128xf32>
    %7 = vector.shape_cast %6 : vector<1x1x1x128xf32> to vector<1x128xf32>
    %8 = vector.shape_cast %5 : vector<1x128xf32> to vector<1x1x1x128xf32>
    tpu.vector_store %arg5[%c0_5, %c0_6, %c0_7, %c0_8], %8 {strides = array<i32>} : memref<1x1x2x128xf32, #tpu.memory_space<vmem>>, vector<1x1x1x128xf32>,
    %9 = arith.mulf %3, %3 : vector<256x128xf32>
    %cst_9 = arith.constant dense<0.000000e+00> : vector<128xf32>
    %10 = vector.multi_reduction <add>, %9, %cst_9 [0] : vector<256x128xf32> to vector<128xf32>
    %11 = vector.shape_cast %10 : vector<128xf32> to vector<1x128xf32>
    %c0_10 = arith.constant 0 : index
    %c0_11 = arith.constant 0 : index
    %c1 = arith.constant 1 : index
    %c0_12 = arith.constant 0 : index
    %12 = vector.load %arg5[%c0_10, %c0_11, %c1, %c0_12] : memref<1x1x2x128xf32, #tpu.memory_space<vmem>>, vector<1x1x1x128xf32>
    %13 = vector.shape_cast %12 : vector<1x1x1x128xf32> to vector<1x128xf32>
    %14 = vector.shape_cast %11 : vector<1x128xf32> to vector<1x1x1x128xf32>
    tpu.vector_store %arg5[%c0_10, %c0_11, %c1, %c0_12], %14 {strides = array<i32>} : memref<1x1x2x128xf32, #tpu.memory_space<vmem>>, vector<1x1x1x128xf32>,
    %15 = arith.truncf %3 : vector<256x128xf32> to vector<256x128xbf16>
    %c0_13 = arith.constant 0 : index
    %c0_14 = arith.constant 0 : index
    %c0_15 = arith.constant 0 : index
    %16 = vector.load %arg4[%c0_13, %c0_14, %c0_15] : memref<1x256x128xbf16, #tpu.memory_space<vmem>>, vector<1x256x128xbf16>
    %17 = vector.shape_cast %16 : vector<1x256x128xbf16> to vector<256x128xbf16>
    %18 = vector.shape_cast %15 : vector<256x128xbf16> to vector<1x256x128xbf16>
    tpu.vector_store %arg4[%c0_13, %c0_14, %c0_15], %18 {strides = array<i32>} : memref<1x256x128xbf16, #tpu.memory_space<vmem>>, vector<1x256x128xbf16>,
    return
  }
  func.func @transform_0(%arg0: i32, %arg1: i32) -> (i32, i32, i32) {
    %c0_i32 = arith.constant 0 : i32
    %c0_i32_0 = arith.constant 0 : i32
    return %arg0, %arg1, %c0_i32 : i32, i32, i32
  }
  func.func @transform_1(%arg0: i32, %arg1: i32) -> (i32, i32) {
    %c0_i32 = arith.constant 0 : i32
    %c0_i32_0 = arith.constant 0 : i32
    %c0_i32_1 = arith.constant 0 : i32
    return %c0_i32, %c0_i32_0 : i32, i32
  }
  func.func @transform_2(%arg0: i32, %arg1: i32) -> (i32, i32, i32) {
    %c0_i32 = arith.constant 0 : i32
    %c0_i32_0 = arith.constant 0 : i32
    return %arg0, %arg1, %c0_i32 : i32, i32, i32
  }
  func.func @transform_3(%arg0: i32, %arg1: i32) -> (i32, i32, i32, i32) {
    %c0_i32 = arith.constant 0 : i32
    %c0_i32_0 = arith.constant 0 : i32
    %c0_i32_1 = arith.constant 0 : i32
    return %arg0, %arg1, %c0_i32, %c0_i32_0 : i32, i32, i32, i32
  }
}

module attributes {stable_mosaic.version = 11 : i64} {
  func.func @_bn_relu_kernel(%arg0: i32, %arg1: i32, %arg2: memref<1x256x128xbf16, #tpu.memory_space<vmem>>, %arg3: memref<1x128xf32, #tpu.memory_space<vmem>>, %arg4: memref<1x128xf32, #tpu.memory_space<vmem>>, %arg5: memref<1x8x256xf32, #tpu.memory_space<vmem>>) attributes {dimension_semantics = [#tpu.dimension_semantics<parallel>, #tpu.dimension_semantics<parallel>], iteration_bounds = array<i64: 2, 1>, scalar_prefetch = 0 : i64, scratch_operands = 0 : i64, tpu.core_type = #tpu.core_type<tc>, window_params = [{transform_indices = @transform_0, window_bounds = array<i64: 1, 256, 128>}, {pipeline_mode = #tpu.pipeline_mode<synchronous>, transform_indices = @transform_1, window_bounds = array<i64: 1, 128>}, {pipeline_mode = #tpu.pipeline_mode<synchronous>, transform_indices = @transform_2, window_bounds = array<i64: 1, 128>}, {transform_indices = @transform_3, window_bounds = array<i64: 1, 8, 256>}]} {
    %c0 = arith.constant 0 : index
    %c0_0 = arith.constant 0 : index
    %c0_1 = arith.constant 0 : index
    %0 = vector.load %arg2[%c0, %c0_0, %c0_1] : memref<1x256x128xbf16, #tpu.memory_space<vmem>>, vector<1x256x128xbf16>
    %1 = vector.shape_cast %0 : vector<1x256x128xbf16> to vector<256x128xbf16>
    %2 = arith.extf %1 : vector<256x128xbf16> to vector<256x128xf32>
    %c0_2 = arith.constant 0 : index
    %c0_3 = arith.constant 0 : index
    %3 = vector.load %arg3[%c0_2, %c0_3] : memref<1x128xf32, #tpu.memory_space<vmem>>, vector<1x128xf32>
    %4 = vector.broadcast %3 : vector<1x128xf32> to vector<256x128xf32>
    %5 = arith.mulf %2, %4 : vector<256x128xf32>
    %c0_4 = arith.constant 0 : index
    %c0_5 = arith.constant 0 : index
    %6 = vector.load %arg4[%c0_4, %c0_5] : memref<1x128xf32, #tpu.memory_space<vmem>>, vector<1x128xf32>
    %7 = vector.broadcast %6 : vector<1x128xf32> to vector<256x128xf32>
    %8 = arith.addf %5, %7 : vector<256x128xf32>
    %cst = arith.constant 0.000000e+00 : f32
    %9 = vector.broadcast %cst : f32 to vector<256x128xf32>
    %10 = arith.maximumf %8, %9 : vector<256x128xf32>
    %11 = tpu.transpose %10, [1, 0] : vector<256x128xf32> -> vector<128x256xf32>
    %12 = vector.extract_strided_slice %11 {offsets = [0, 0], sizes = [8, 256], strides = [1, 1]} : vector<128x256xf32> to vector<8x256xf32>
    %c0_6 = arith.constant 0 : index
    %c0_7 = arith.constant 0 : index
    %c0_8 = arith.constant 0 : index
    %13 = vector.load %arg5[%c0_6, %c0_7, %c0_8] : memref<1x8x256xf32, #tpu.memory_space<vmem>>, vector<1x8x256xf32>
    %14 = vector.shape_cast %13 : vector<1x8x256xf32> to vector<8x256xf32>
    %15 = vector.shape_cast %12 : vector<8x256xf32> to vector<1x8x256xf32>
    tpu.vector_store %arg5[%c0_6, %c0_7, %c0_8], %15 {strides = array<i32>} : memref<1x8x256xf32, #tpu.memory_space<vmem>>, vector<1x8x256xf32>,
    return
  }
  func.func @transform_0(%arg0: i32, %arg1: i32) -> (i32, i32, i32) {
    %c0_i32 = arith.constant 0 : i32
    %c0_i32_0 = arith.constant 0 : i32
    return %arg0, %arg1, %c0_i32 : i32, i32, i32
  }
  func.func @transform_1(%arg0: i32, %arg1: i32) -> (i32, i32) {
    %c0_i32 = arith.constant 0 : i32
    %c0_i32_0 = arith.constant 0 : i32
    %c0_i32_1 = arith.constant 0 : i32
    return %c0_i32, %c0_i32_0 : i32, i32
  }
  func.func @transform_2(%arg0: i32, %arg1: i32) -> (i32, i32) {
    %c0_i32 = arith.constant 0 : i32
    %c0_i32_0 = arith.constant 0 : i32
    %c0_i32_1 = arith.constant 0 : i32
    return %c0_i32, %c0_i32_0 : i32, i32
  }
  func.func @transform_3(%arg0: i32, %arg1: i32) -> (i32, i32, i32) {
    %c0_i32 = arith.constant 0 : i32
    %c0_i32_0 = arith.constant 0 : i32
    return %arg0, %c0_i32, %arg1 : i32, i32, i32
  }
}

</mosaic_0001>

<llo_original>
// kernel: conv_bn_relu.3
$region0: #{conv_bn_relu.3}
  #allocation0 [shape = 'u32[]', space=smem, size = 0x4, offset = 0x4, fixed_abs, tag = 'smem constant byte address 0x4 - core index']
  #allocation1 [shape = 'u32[144,128]{1,0:T(1,128)}', space=vmem, size = 0x12000, scoped, tag = 'internal scratch']
  %s0 = inlined_call_operand.vmem [shape: bf16[2,256,128], index: 0, kind: input, shape index: {}]
  %s1 = inlined_call_operand.vmem [shape: f32[1,128], index: 1, kind: input, shape index: {}]
  %s2 = inlined_call_operand.vmem [shape: f32[1,128], index: 2, kind: input, shape index: {}]
  %s3 = inlined_call_operand.vmem [shape: f32[2,8,256], index: 3, kind: output, shape index: {}]
  %s4 = sld [smem:[#allocation0]]
  $region45: #{conv_bn_relu.3} parent=0
    _
  %s6 = ssub.s32 1, %s4
  %s7 = scalar_select 0, %s6, %s4
  loop: start=0, step=1, limit=4
  $region2: #{conv_bn_relu.3} parent=0 // loop_pre_header
    _
  $region3: #{conv_bn_relu.3} parent=0 // loop_header
    %s9 = sphi 0, %s13
    %p10 = scmp.ge.s32.totalorder %s9, 4
    %s16 = sphi 0, %s28
    %s17 = sphi 0, %s24
    %s18 = sphi 0, %s16
    %s19 = sphi 0, %s17
    %s20 = sphi 0, %s18
    %s21 = sphi 0, %s19
    %s33 = sphi 0, %s35
    %s36 = sphi 0, %s33
    %s37 = sphi 0, %s36
    %s53 = sphi 0, %s37
    %s57 = sphi 0, %s57
    %s59 = sphi 0, %s57
    %s60 = sphi 0, %s59
    %s74 = sphi 0, %s60
    %s78 = sphi 0, %s78
    %s80 = sphi 0, %s78
    %s81 = sphi 0, %s80
    %s95 = sphi 0, %s81
    %s103 = sphi 0, %s105
    %s106 = sphi 0, %s103
    %s107 = sphi 0, %s106
    %s123 = sphi 0, %s107
  $region4: #{conv_bn_relu.3} parent=0 // loop_header_branch
    %12 = sbr.rel (%p10) target = $region8
  $region5: #{conv_bn_relu.3} parent=0 // loop_body
    %s14 = ssub.s32 %s9, 1
    %s15 = ssub.s32 %s9, 2
    %s22 = sadd.s32 1, %s17
    %p23 = scmp.ge.s32.totalorder %s22, 1
    %s24 = scalar_select %p23, 0, %s22
    %s25 = sadd.s32 1, %s16
    %s26 = scalar_select %p23, %s25, %s16
    %p27 = scmp.ge.s32.totalorder %s26, 2
    %s28 = scalar_select %p27, 0, %s26
    %s29 = ssub.s32 %s16, %s28
    %s30 = ssub.s32 %s17, %s24
    %s31 = sor.u32 %s29, %s30
    %p32 = scmp.eq.s32.totalorder %s31, 0
    %s34 = sadd.s32 %s33, 1
    %s35 = scalar_select %p32, %s33, %s34
    %p38 = pneg %p32
    %p39 = scmp.eq.s32.totalorder %s9, 1
    %p40 = por %p38, %p39
    %p41 = scmp.ne.s32.totalorder %s33, %s36
    %p42 = scmp.eq.s32.totalorder %s9, 0
    %p43 = por %p41, %p42
    %p44 = scmp.ne.s32.totalorder %s33, %s36
    %p45 = scmp.eq.s32.totalorder %s14, 1
    %p46 = por %p44, %p45
    %p47 = scmp.ne.s32.totalorder %s36, %s37
    %p48 = scmp.eq.s32.totalorder %s14, 0
    %p49 = por %p47, %p48
    %p50 = scmp.ne.s32.totalorder %s36, %s37
    %p51 = scmp.eq.s32.totalorder %s15, 1
    %p52 = por %p50, %p51
    %p54 = scmp.ne.s32.totalorder %s37, %s53
    %p55 = scmp.eq.s32.totalorder %s15, 0
    %p56 = por %p54, %p55
    %s58 = sadd.s32 %s57, 1
    %p61 = scmp.eq.s32.totalorder %s9, 1
    %p62 = scmp.ne.s32.totalorder %s57, %s59
    %p63 = scmp.eq.s32.totalorder %s9, 0
    %p64 = por %p62, %p63
    %p65 = scmp.ne.s32.totalorder %s57, %s59
    %p66 = scmp.eq.s32.totalorder %s14, 1
    %p67 = por %p65, %p66
    %p68 = scmp.ne.s32.totalorder %s59, %s60
    %p69 = scmp.eq.s32.totalorder %s14, 0
    %p70 = por %p68, %p69
    %p71 = scmp.ne.s32.totalorder %s59, %s60
    %p72 = scmp.eq.s32.totalorder %s15, 1
    %p73 = por %p71, %p72
    %p75 = scmp.ne.s32.totalorder %s60, %s74
    %p76 = scmp.eq.s32.totalorder %s15, 0
    %p77 = por %p75, %p76
    %s79 = sadd.s32 %s78, 1
    %p82 = scmp.eq.s32.totalorder %s9, 1
    %p83 = scmp.ne.s32.totalorder %s78, %s80
    %p84 = scmp.eq.s32.totalorder %s9, 0
    %p85 = por %p83, %p84
    %p86 = scmp.ne.s32.totalorder %s78, %s80
    %p87 = scmp.eq.s32.totalorder %s14, 1
    %p88 = por %p86, %p87
    %p89 = scmp.ne.s32.totalorder %s80, %s81
    %p90 = scmp.eq.s32.totalorder %s14, 0
    %p91 = por %p89, %p90
    %p92 = scmp.ne.s32.totalorder %s80, %s81
    %p93 = scmp.eq.s32.totalorder %s15, 1
    %p94 = por %p92, %p93
    %p96 = scmp.ne.s32.totalorder %s81, %s95
    %p97 = scmp.eq.s32.totalorder %s15, 0
    %p98 = por %p96, %p97
    %s99 = ssub.s32 %s16, %s28
    %s100 = ssub.s32 %s17, %s24
    %s101 = sor.u32 %s99, %s100
    %p102 = scmp.eq.s32.totalorder %s101, 0
    %s104 = sadd.s32 %s103, 1
    %s105 = scalar_select %p102, %s103, %s104
    %p108 = pneg %p102
    %p109 = scmp.eq.s32.totalorder %s9, 1
    %p110 = por %p108, %p109
    %p111 = scmp.ne.s32.totalorder %s103, %s106
    %p112 = scmp.eq.s32.totalorder %s9, 0
    %p113 = por %p111, %p112
    %p114 = scmp.ne.s32.totalorder %s103, %s106
    %p115 = scmp.eq.s32.totalorder %s14, 1
    %p116 = por %p114, %p115
    %p117 = scmp.ne.s32.totalorder %s106, %s107
    %p118 = scmp.eq.s32.totalorder %s14, 0
    %p119 = por %p117, %p118
    %p120 = scmp.ne.s32.totalorder %s106, %s107
    %p121 = scmp.eq.s32.totalorder %s15, 1
    %p122 = por %p120, %p121
    %p124 = scmp.ne.s32.totalorder %s107, %s123
    %p125 = scmp.eq.s32.totalorder %s15, 0
    %p126 = por %p124, %p125
    %p127 = scmp.le.s32.totalorder 1, %s9
    %p128 = scmp.lt.s32.totalorder %s9, 3
    %p129 = pnand %p127, %p128
    %p130 = pneg %p129
    // Predicated region
    $region9: #{conv_bn_relu.3} parent=5 // pred_check
      _
    $region10: #{conv_bn_relu.3} parent=5 // pred_check_branch
      %132 = sbr.rel (%p129) target = $region12
    $region11: #{conv_bn_relu.3} parent=5 // pred_region
      %s133 = ssub.s32 %s9, 1
      // Predicated region
      $region13: #{conv_bn_relu.3} parent=11 // pred_check
        %p134 = pneg %p70
      $region14: #{conv_bn_relu.3} parent=11 // pred_check_branch
        %136 = sbr.rel (%p134) target = $region16
      $region15: #{conv_bn_relu.3} parent=11 // pred_region
        _
      $region16: #{conv_bn_relu.3} parent=11 // pred_fallthru
        _
      // Predicated region
      $region17: #{conv_bn_relu.3} parent=11 // pred_check
        %p137 = pneg %p91
      $region18: #{conv_bn_relu.3} parent=11 // pred_check_branch
        %139 = sbr.rel (%p137) target = $region20
      $region19: #{conv_bn_relu.3} parent=11 // pred_region
        _
      $region20: #{conv_bn_relu.3} parent=11 // pred_fallthru
        _
    $region12: #{conv_bn_relu.3} parent=5 // pred_fallthru
      _
    %p140 = scmp.lt.s32.totalorder %s9, 2
    // Predicated region
    $region21: #{conv_bn_relu.3} parent=5 // pred_check
      %p141 = pneg %p140
    $region22: #{conv_bn_relu.3} parent=5 // pred_check_branch
      %143 = sbr.rel (%p141) target = $region24
    $region23: #{conv_bn_relu.3} parent=5 // pred_region
      // Predicated region
      $region25: #{conv_bn_relu.3} parent=23 // pred_check
        %p144 = pneg %p43
      $region26: #{conv_bn_relu.3} parent=23 // pred_check_branch
        %146 = sbr.rel (%p144) target = $region28
      $region27: #{conv_bn_relu.3} parent=23 // pred_region
        %s147 = smul.u32 32, %s17
        %p148 = scmp.lt.s32.totalorder %s16, 1
        %s149 = scalar_select %p148, %s16, 1
        %p150 = scmp.lt.s32.totalorder %s147, 31
        %s151 = scalar_select %p150, %s147, 31
        %s152 = smul.addr %s149, 32
        %s153 = sadd.s32 %s151, %s152
        %s154 = smul.addr %s153, 4
        %s155 = scalar_lea.vmem %s0, %s154
        %s156 = smul.u32 32, %s17
      $region28: #{conv_bn_relu.3} parent=23 // pred_fallthru
        _
    $region24: #{conv_bn_relu.3} parent=5 // pred_fallthru
      _
    %p157 = scmp.le.s32.totalorder 1, %s9
    %p158 = scmp.lt.s32.totalorder %s9, 3
    %p159 = pnand %p157, %p158
    %p160 = pneg %p159
    // Predicated region
    $region29: #{conv_bn_relu.3} parent=5 // pred_check
      _
    $region30: #{conv_bn_relu.3} parent=5 // pred_check_branch
      %162 = sbr.rel (%p159) target = $region32
    $region31: #{conv_bn_relu.3} parent=5 // pred_region
      %s163 = ssub.s32 %s9, 1
      %s164 = smul.u32 32, %s19
      %p165 = scmp.lt.s32.totalorder %s18, 1
      %s166 = scalar_select %p165, %s18, 1
      %p167 = scmp.lt.s32.totalorder %s164, 31
      %s168 = scalar_select %p167, %s164, 31
      %s169 = smul.addr %s166, 32
      %s170 = sadd.s32 %s168, %s169
      %s171 = smul.addr %s170, 4
      %s172 = scalar_lea.vmem %s0, %s171
      %p173 = pneg %p49
      %p174 = pneg %p46
      %p175 = pneg %p70
      %p176 = pneg %p67
      %p177 = pneg %p91
      %p178 = pneg %p88
      %p179 = pneg %p119
      %p180 = pneg %p116
      %s181 = smul.u32 2, %s19
      %p182 = scmp.lt.s32.totalorder %s18, 1
      %s183 = scalar_select %p182, %s18, 1
      %p184 = scmp.lt.s32.totalorder %s181, 1
      %s185 = scalar_select %p184, %s181, 1
      %s186 = smul.addr %s183, 2
      %s187 = sadd.s32 %s185, %s186
      %s188 = smul.addr %s187, 8
      %s189 = scalar_lea.vmem %s3, %s188
      %s190 = smul.u32 32, %s19
      %p191 = scmp.lt.s32.totalorder %s18, 1
      %s192 = scalar_select %p191, %s18, 1
      %p193 = scmp.lt.s32.totalorder %s190, 31
      %s194 = scalar_select %p193, %s190, 31
      %s195 = smul.addr %s192, 32
      %s196 = sadd.s32 %s194, %s195
      %s197 = smul.addr %s196, 4
      %s198 = scalar_lea.vmem %s0, %s197
      %s199 = smul.u32 32, %s19
      %s200 = smul.u32 2, %s19
      %p201 = scmp.lt.s32.totalorder %s18, 1
      %s202 = scalar_select %p201, %s18, 1
      %p203 = scmp.lt.s32.totalorder %s200, 1
      %s204 = scalar_select %p203, %s200, 1
      %s205 = smul.addr %s202, 2
      %s206 = sadd.s32 %s204, %s205
      %s207 = smul.addr %s206, 8
      %s208 = scalar_lea.vmem %s3, %s207
      %s209 = smul.u32 2, %s19
      %v210 = vld [vmem:[%s198] sm:$0xf]
      %v211 = vld [vmem:[%s198 + $0x4] sm:$0xf]
      %v212 = vld [vmem:[%s198 + $0x8] sm:$0xf]
      %v213 = vld [vmem:[%s198 + $0xc] sm:$0xf]
      %v214 = vld [vmem:[%s198 + $0x10] sm:$0xf]
      %v215 = vld [vmem:[%s198 + $0x14] sm:$0xf]
      %v216 = vld [vmem:[%s198 + $0x18] sm:$0xf]
      %v217 = vld [vmem:[%s198 + $0x1c] sm:$0xf]
      %v218 = vld [vmem:[%s198 + $0x20] sm:$0xf]
      %v219 = vld [vmem:[%s198 + $0x24] sm:$0xf]
      %v220 = vld [vmem:[%s198 + $0x28] sm:$0xf]
      %v221 = vld [vmem:[%s198 + $0x2c] sm:$0xf]
      %v222 = vld [vmem:[%s198 + $0x30] sm:$0xf]
      %v223 = vld [vmem:[%s198 + $0x34] sm:$0xf]
      %v224 = vld [vmem:[%s198 + $0x38] sm:$0xf]
      %v225 = vld [vmem:[%s198 + $0x3c] sm:$0xf]
      %v226 = vld [vmem:[%s198 + $0x40] sm:$0xf]
      %v227 = vld [vmem:[%s198 + $0x44] sm:$0xf]
      %v228 = vld [vmem:[%s198 + $0x48] sm:$0xf]
      %v229 = vld [vmem:[%s198 + $0x4c] sm:$0xf]
      %v230 = vld [vmem:[%s198 + $0x50] sm:$0xf]
      %v231 = vld [vmem:[%s198 + $0x54] sm:$0xf]
      %v232 = vld [vmem:[%s198 + $0x58] sm:$0xf]
      %v233 = vld [vmem:[%s198 + $0x5c] sm:$0xf]
      %v234 = vld [vmem:[%s198 + $0x60] sm:$0xf]
      %v235 = vld [vmem:[%s198 + $0x64] sm:$0xf]
      %v236 = vld [vmem:[%s198 + $0x68] sm:$0xf]
      %v237 = vld [vmem:[%s198 + $0x6c] sm:$0xf]
      %v238 = vld [vmem:[%s198 + $0x70] sm:$0xf]
      %v239 = vld [vmem:[%s198 + $0x74] sm:$0xf]
      %v240 = vld [vmem:[%s198 + $0x78] sm:$0xf]
      %v241 = vld [vmem:[%s198 + $0x7c] sm:$0xf]
      %v242 = vunpack.c.l.bf16 %v210
      %v243 = vunpack.c.l.bf16 %v211
      %v244 = vunpack.c.l.bf16 %v212
      %v245 = vunpack.c.l.bf16 %v213
      %v246 = vunpack.c.l.bf16 %v214
      %v247 = vunpack.c.l.bf16 %v215
      %v248 = vunpack.c.l.bf16 %v216
      %v249 = vunpack.c.l.bf16 %v217
      %v250 = vunpack.c.l.bf16 %v218
      %v251 = vunpack.c.l.bf16 %v219
      %v252 = vunpack.c.l.bf16 %v220
      %v253 = vunpack.c.l.bf16 %v221
      %v254 = vunpack.c.l.bf16 %v222
      %v255 = vunpack.c.l.bf16 %v223
      %v256 = vunpack.c.l.bf16 %v224
      %v257 = vunpack.c.l.bf16 %v225
      %v258 = vunpack.c.l.bf16 %v226
      %v259 = vunpack.c.l.bf16 %v227
      %v260 = vunpack.c.l.bf16 %v228
      %v261 = vunpack.c.l.bf16 %v229
      %v262 = vunpack.c.l.bf16 %v230
      %v263 = vunpack.c.l.bf16 %v231
      %v264 = vunpack.c.l.bf16 %v232
      %v265 = vunpack.c.l.bf16 %v233
      %v266 = vunpack.c.l.bf16 %v234
      %v267 = vunpack.c.l.bf16 %v235
      %v268 = vunpack.c.l.bf16 %v236
      %v269 = vunpack.c.l.bf16 %v237
      %v270 = vunpack.c.l.bf16 %v238
      %v271 = vunpack.c.l.bf16 %v239
      %v272 = vunpack.c.l.bf16 %v240
      %v273 = vunpack.c.l.bf16 %v241
      %v274 = vld [vmem:[%s1] sm:$0x1]
      %v276 = vlaneseq
      %v277 = vshrl.u32 %v276, 7
      %v278 = vsub.s32 0, %v277
      %v279 = vrot.slane %v274, %v278
      %v281 = vmul.f32 %v242, %v279
      %v282 = vmul.f32 %v243, %v279
      %v283 = vmul.f32 %v244, %v279
      %v284 = vmul.f32 %v245, %v279
      %v285 = vmul.f32 %v246, %v279
      %v286 = vmul.f32 %v247, %v279
      %v287 = vmul.f32 %v248, %v279
      %v288 = vmul.f32 %v249, %v279
      %v289 = vmul.f32 %v250, %v279
      %v290 = vmul.f32 %v251, %v279
      %v291 = vmul.f32 %v252, %v279
      %v292 = vmul.f32 %v253, %v279
      %v293 = vmul.f32 %v254, %v279
      %v294 = vmul.f32 %v255, %v279
      %v295 = vmul.f32 %v256, %v279
      %v296 = vmul.f32 %v257, %v279
      %v297 = vmul.f32 %v258, %v279
      %v298 = vmul.f32 %v259, %v279
      %v299 = vmul.f32 %v260, %v279
      %v300 = vmul.f32 %v261, %v279
      %v301 = vmul.f32 %v262, %v279
      %v302 = vmul.f32 %v263, %v279
      %v303 = vmul.f32 %v264, %v279
      %v304 = vmul.f32 %v265, %v279
      %v305 = vmul.f32 %v266, %v279
      %v306 = vmul.f32 %v267, %v279
      %v307 = vmul.f32 %v268, %v279
      %v308 = vmul.f32 %v269, %v279
      %v309 = vmul.f32 %v270, %v279
      %v310 = vmul.f32 %v271, %v279
      %v311 = vmul.f32 %v272, %v279
      %v312 = vmul.f32 %v273, %v279
      %v313 = vld [vmem:[%s2] sm:$0x1]
      %v315 = vlaneseq
      %v316 = vshrl.u32 %v315, 7
      %v317 = vsub.s32 0, %v316
      %v318 = vrot.slane %v313, %v317
      %v320 = vadd.f32 %v281, %v318
      %v321 = vadd.f32 %v282, %v318
      %v322 = vadd.f32 %v283, %v318
      %v323 = vadd.f32 %v284, %v318
      %v324 = vadd.f32 %v285, %v318
      %v325 = vadd.f32 %v286, %v318
      %v326 = vadd.f32 %v287, %v318
      %v327 = vadd.f32 %v288, %v318
      %v328 = vadd.f32 %v289, %v318
      %v329 = vadd.f32 %v290, %v318
      %v330 = vadd.f32 %v291, %v318
      %v331 = vadd.f32 %v292, %v318
      %v332 = vadd.f32 %v293, %v318
      %v333 = vadd.f32 %v294, %v318
      %v334 = vadd.f32 %v295, %v318
      %v335 = vadd.f32 %v296, %v318
      %v336 = vadd.f32 %v297, %v318
      %v337 = vadd.f32 %v298, %v318
      %v338 = vadd.f32 %v299, %v318
      %v339 = vadd.f32 %v300, %v318
      %v340 = vadd.f32 %v301, %v318
      %v341 = vadd.f32 %v302, %v318
      %v342 = vadd.f32 %v303, %v318
      %v343 = vadd.f32 %v304, %v318
      %v344 = vadd.f32 %v305, %v318
      %v345 = vadd.f32 %v306, %v318
      %v346 = vadd.f32 %v307, %v318
      %v347 = vadd.f32 %v308, %v318
      %v348 = vadd.f32 %v309, %v318
      %v349 = vadd.f32 %v310, %v318
      %v350 = vadd.f32 %v311, %v318
      %v351 = vadd.f32 %v312, %v318
      %v352 = vmax.f32 %v320, 0.0
      %v353 = vmax.f32 %v321, 0.0
      %v354 = vmax.f32 %v322, 0.0
      %v355 = vmax.f32 %v323, 0.0
      %v356 = vmax.f32 %v324, 0.0
      %v357 = vmax.f32 %v325, 0.0
      %v358 = vmax.f32 %v326, 0.0
      %v359 = vmax.f32 %v327, 0.0
      %v360 = vmax.f32 %v328, 0.0
      %v361 = vmax.f32 %v329, 0.0
      %v362 = vmax.f32 %v330, 0.0
      %v363 = vmax.f32 %v331, 0.0
      %v364 = vmax.f32 %v332, 0.0
      %v365 = vmax.f32 %v333, 0.0
      %v366 = vmax.f32 %v334, 0.0
      %v367 = vmax.f32 %v335, 0.0
      %v368 = vmax.f32 %v336, 0.0
      %v369 = vmax.f32 %v337, 0.0
      %v370 = vmax.f32 %v338, 0.0
      %v371 = vmax.f32 %v339, 0.0
      %v372 = vmax.f32 %v340, 0.0
      %v373 = vmax.f32 %v341, 0.0
      %v374 = vmax.f32 %v342, 0.0
      %v375 = vmax.f32 %v343, 0.0
      %v376 = vmax.f32 %v344, 0.0
      %v377 = vmax.f32 %v345, 0.0
      %v378 = vmax.f32 %v346, 0.0
      %v379 = vmax.f32 %v347, 0.0
      %v380 = vmax.f32 %v348, 0.0
      %v381 = vmax.f32 %v349, 0.0
      %v382 = vmax.f32 %v350, 0.0
      %v383 = vmax.f32 %v351, 0.0
      %384 = vxpose.xlu0.b32.start [1/16] %v352, 128
      %385 = vxpose.xlu0.b32.cont [2/16] %v353, 128
      %386 = vxpose.xlu0.b32.cont [3/16] %v354, 128
      %387 = vxpose.xlu0.b32.cont [4/16] %v355, 128
      %388 = vxpose.xlu0.b32.cont [5/16] %v356, 128
      %389 = vxpose.xlu0.b32.cont [6/16] %v357, 128
      %390 = vxpose.xlu0.b32.cont [7/16] %v358, 128
      %391 = vxpose.xlu0.b32.cont [8/16] %v359, 128
      %392 = vxpose.xlu0.b32.cont [9/16] %v360, 128
      %393 = vxpose.xlu0.b32.cont [10/16] %v361, 128
      %394 = vxpose.xlu0.b32.cont [11/16] %v362, 128
      %395 = vxpose.xlu0.b32.cont [12/16] %v363, 128
      %396 = vxpose.xlu0.b32.cont [13/16] %v364, 128
      %397 = vxpose.xlu0.b32.cont [14/16] %v365, 128
      %398 = vxpose.xlu0.b32.cont [15/16] %v366, 128
      %399 = vxpose.xlu0.b32.end [16/16] %v367, 128
      %v400 = vpop.trf.xlu0
      %v401 = vpop.trf.xlu0
      %v402 = vpop.trf.xlu0
      %v403 = vpop.trf.xlu0
      %v404 = vpop.trf.xlu0
      %v405 = vpop.trf.xlu0
      %v406 = vpop.trf.xlu0
      %v407 = vpop.trf.xlu0
      %v408 = vpop.trf.xlu0
      %v409 = vpop.trf.xlu0
      %v410 = vpop.trf.xlu0
      %v411 = vpop.trf.xlu0
      %v412 = vpop.trf.xlu0
      %v413 = vpop.trf.xlu0
      %v414 = vpop.trf.xlu0
      %v415 = vpop.trf.xlu0
      %416 = vxpose.xlu0.b32.start [1/16] %v368, 128
      %417 = vxpose.xlu0.b32.cont [2/16] %v369, 128
      %418 = vxpose.xlu0.b32.cont [3/16] %v370, 128
      %419 = vxpose.xlu0.b32.cont [4/16] %v371, 128
      %420 = vxpose.xlu0.b32.cont [5/16] %v372, 128
      %421 = vxpose.xlu0.b32.cont [6/16] %v373, 128
      %422 = vxpose.xlu0.b32.cont [7/16] %v374, 128
      %423 = vxpose.xlu0.b32.cont [8/16] %v375, 128
      %424 = vxpose.xlu0.b32.cont [9/16] %v376, 128
      %425 = vxpose.xlu0.b32.cont [10/16] %v377, 128
      %426 = vxpose.xlu0.b32.cont [11/16] %v378, 128
      %427 = vxpose.xlu0.b32.cont [12/16] %v379, 128
      %428 = vxpose.xlu0.b32.cont [13/16] %v380, 128
      %429 = vxpose.xlu0.b32.cont [14/16] %v381, 128
      %430 = vxpose.xlu0.b32.cont [15/16] %v382, 128
      %431 = vxpose.xlu0.b32.end [16/16] %v383, 128
      %v432 = vpop.trf.xlu0
      %v433 = vpop.trf.xlu0
      %v434 = vpop.trf.xlu0
      %v435 = vpop.trf.xlu0
      %v436 = vpop.trf.xlu0
      %v437 = vpop.trf.xlu0
      %v438 = vpop.trf.xlu0
      %v439 = vpop.trf.xlu0
      %v440 = vpop.trf.xlu0
      %v441 = vpop.trf.xlu0
      %v442 = vpop.trf.xlu0
      %v443 = vpop.trf.xlu0
      %v444 = vpop.trf.xlu0
      %v445 = vpop.trf.xlu0
      %v446 = vpop.trf.xlu0
      %v447 = vpop.trf.xlu0
      %448 = vst [vmem:[%s208] sm:$0xff] %v400
      %449 = vst [vmem:[%s208 + $0x8] sm:$0xff] %v432
      %s450 = smul.u32 2, %s19
      %p451 = scmp.lt.s32.totalorder %s18, 1
      %s452 = scalar_select %p451, %s18, 1
      %p453 = scmp.lt.s32.totalorder %s450, 1
      %s454 = scalar_select %p453, %s450, 1
      %s455 = smul.addr %s452, 2
      %s456 = sadd.s32 %s454, %s455
      %s457 = smul.addr %s456, 8
      %s458 = scalar_lea.vmem %s3, %s457
      // Predicated region
      $region33: #{conv_bn_relu.3} parent=31 // pred_check
        %p459 = pneg %p116
      $region34: #{conv_bn_relu.3} parent=31 // pred_check_branch
        %461 = sbr.rel (%p459) target = $region36
      $region35: #{conv_bn_relu.3} parent=31 // pred_region
        %s462 = smul.u32 2, %s19
      $region36: #{conv_bn_relu.3} parent=31 // pred_fallthru
        _
    $region32: #{conv_bn_relu.3} parent=5 // pred_fallthru
      _
    %p463 = scmp.le.s32.totalorder 2, %s9
    // Predicated region
    $region37: #{conv_bn_relu.3} parent=5 // pred_check
      %p464 = pneg %p463
    $region38: #{conv_bn_relu.3} parent=5 // pred_check_branch
      %466 = sbr.rel (%p464) target = $region40
    $region39: #{conv_bn_relu.3} parent=5 // pred_region
      %s467 = ssub.s32 %s9, 2
      // Predicated region
      $region41: #{conv_bn_relu.3} parent=39 // pred_check
        %p468 = pneg %p122
      $region42: #{conv_bn_relu.3} parent=39 // pred_check_branch
        %470 = sbr.rel (%p468) target = $region44
      $region43: #{conv_bn_relu.3} parent=39 // pred_region
        %s471 = smul.u32 2, %s21
        %p472 = scmp.lt.s32.totalorder %s20, 1
        %s473 = scalar_select %p472, %s20, 1
        %p474 = scmp.lt.s32.totalorder %s471, 1
        %s475 = scalar_select %p474, %s471, 1
        %s476 = smul.addr %s473, 2
        %s477 = sadd.s32 %s475, %s476
        %s478 = smul.addr %s477, 8
        %s479 = scalar_lea.vmem %s3, %s478
      $region44: #{conv_bn_relu.3} parent=39 // pred_fallthru
        _
    $region40: #{conv_bn_relu.3} parent=5 // pred_fallthru
      _
  $region6: #{conv_bn_relu.3} parent=0 // loop_footer
    %s13 = sadd.s32 1, %s9
  $region7: #{conv_bn_relu.3} parent=0 // loop_footer_branch
    %8 = sbr.rel target = $region3
  $region8: #{conv_bn_relu.3} parent=0 // loop_exit
    _

// kernel: conv_bn_relu.2
$region0: #{conv_bn_relu.2}
  #allocation0 [shape = 'u32[]', space=smem, size = 0x4, offset = 0x4, fixed_abs, tag = 'smem constant byte address 0x4 - core index']
  #allocation1 [shape = 'u32[144,128]{1,0:T(1,128)}', space=vmem, size = 0x12000, scoped, tag = 'internal scratch']
  %s0 = inlined_call_operand.vmem [shape: bf16[2,256,128], index: 0, kind: input, shape index: {}]
  %s1 = inlined_call_operand.vmem [shape: bf16[128,128], index: 1, kind: input, shape index: {}]
  %s2 = inlined_call_operand.vmem [shape: bf16[2,256,128], index: 2, kind: output, shape index: {0}]
  %s3 = inlined_call_operand.vmem [shape: f32[2,1,2,128], index: 3, kind: output, shape index: {1}]
  %4 = xla_tuple %s2, %s3
  %s5 = sld [smem:[#allocation0]]
  $region49: #{conv_bn_relu.2} parent=0
    _
  %s7 = ssub.s32 1, %s5
  %s8 = scalar_select 0, %s7, %s5
  loop: start=0, step=1, limit=4
  $region2: #{conv_bn_relu.2} parent=0 // loop_pre_header
    _
  $region3: #{conv_bn_relu.2} parent=0 // loop_header
    %s10 = sphi 0, %s14
    %p11 = scmp.ge.s32.totalorder %s10, 4
    %s17 = sphi 0, %s29
    %s18 = sphi 0, %s25
    %s19 = sphi 0, %s17
    %s20 = sphi 0, %s18
    %s21 = sphi 0, %s19
    %s22 = sphi 0, %s20
    %s34 = sphi 0, %s36
    %s37 = sphi 0, %s34
    %s38 = sphi 0, %s37
    %s54 = sphi 0, %s38
    %s58 = sphi 0, %s58
    %s60 = sphi 0, %s58
    %s61 = sphi 0, %s60
    %s75 = sphi 0, %s61
    %s83 = sphi 0, %s85
    %s86 = sphi 0, %s83
    %s87 = sphi 0, %s86
    %s103 = sphi 0, %s87
    %s111 = sphi 0, %s113
    %s114 = sphi 0, %s111
    %s115 = sphi 0, %s114
    %s131 = sphi 0, %s115
  $region4: #{conv_bn_relu.2} parent=0 // loop_header_branch
    %13 = sbr.rel (%p11) target = $region8
  $region5: #{conv_bn_relu.2} parent=0 // loop_body
    %s15 = ssub.s32 %s10, 1
    %s16 = ssub.s32 %s10, 2
    %s23 = sadd.s32 1, %s18
    %p24 = scmp.ge.s32.totalorder %s23, 1
    %s25 = scalar_select %p24, 0, %s23
    %s26 = sadd.s32 1, %s17
    %s27 = scalar_select %p24, %s26, %s17
    %p28 = scmp.ge.s32.totalorder %s27, 2
    %s29 = scalar_select %p28, 0, %s27
    %s30 = ssub.s32 %s17, %s29
    %s31 = ssub.s32 %s18, %s25
    %s32 = sor.u32 %s30, %s31
    %p33 = scmp.eq.s32.totalorder %s32, 0
    %s35 = sadd.s32 %s34, 1
    %s36 = scalar_select %p33, %s34, %s35
    %p39 = pneg %p33
    %p40 = scmp.eq.s32.totalorder %s10, 1
    %p41 = por %p39, %p40
    %p42 = scmp.ne.s32.totalorder %s34, %s37
    %p43 = scmp.eq.s32.totalorder %s10, 0
    %p44 = por %p42, %p43
    %p45 = scmp.ne.s32.totalorder %s34, %s37
    %p46 = scmp.eq.s32.totalorder %s15, 1
    %p47 = por %p45, %p46
    %p48 = scmp.ne.s32.totalorder %s37, %s38
    %p49 = scmp.eq.s32.totalorder %s15, 0
    %p50 = por %p48, %p49
    %p51 = scmp.ne.s32.totalorder %s37, %s38
    %p52 = scmp.eq.s32.totalorder %s16, 1
    %p53 = por %p51, %p52
    %p55 = scmp.ne.s32.totalorder %s38, %s54
    %p56 = scmp.eq.s32.totalorder %s16, 0
    %p57 = por %p55, %p56
    %s59 = sadd.s32 %s58, 1
    %p62 = scmp.eq.s32.totalorder %s10, 1
    %p63 = scmp.ne.s32.totalorder %s58, %s60
    %p64 = scmp.eq.s32.totalorder %s10, 0
    %p65 = por %p63, %p64
    %p66 = scmp.ne.s32.totalorder %s58, %s60
    %p67 = scmp.eq.s32.totalorder %s15, 1
    %p68 = por %p66, %p67
    %p69 = scmp.ne.s32.totalorder %s60, %s61
    %p70 = scmp.eq.s32.totalorder %s15, 0
    %p71 = por %p69, %p70
    %p72 = scmp.ne.s32.totalorder %s60, %s61
    %p73 = scmp.eq.s32.totalorder %s16, 1
    %p74 = por %p72, %p73
    %p76 = scmp.ne.s32.totalorder %s61, %s75
    %p77 = scmp.eq.s32.totalorder %s16, 0
    %p78 = por %p76, %p77
    %s79 = ssub.s32 %s17, %s29
    %s80 = ssub.s32 %s18, %s25
    %s81 = sor.u32 %s79, %s80
    %p82 = scmp.eq.s32.totalorder %s81, 0
    %s84 = sadd.s32 %s83, 1
    %s85 = scalar_select %p82, %s83, %s84
    %p88 = pneg %p82
    %p89 = scmp.eq.s32.totalorder %s10, 1
    %p90 = por %p88, %p89
    %p91 = scmp.ne.s32.totalorder %s83, %s86
    %p92 = scmp.eq.s32.totalorder %s10, 0
    %p93 = por %p91, %p92
    %p94 = scmp.ne.s32.totalorder %s83, %s86
    %p95 = scmp.eq.s32.totalorder %s15, 1
    %p96 = por %p94, %p95
    %p97 = scmp.ne.s32.totalorder %s86, %s87
    %p98 = scmp.eq.s32.totalorder %s15, 0
    %p99 = por %p97, %p98
    %p100 = scmp.ne.s32.totalorder %s86, %s87
    %p101 = scmp.eq.s32.totalorder %s16, 1
    %p102 = por %p100, %p101
    %p104 = scmp.ne.s32.totalorder %s87, %s103
    %p105 = scmp.eq.s32.totalorder %s16, 0
    %p106 = por %p104, %p105
    %s107 = ssub.s32 %s17, %s29
    %s108 = ssub.s32 %s18, %s25
    %s109 = sor.u32 %s107, %s108
    %p110 = scmp.eq.s32.totalorder %s109, 0
    %s112 = sadd.s32 %s111, 1
    %s113 = scalar_select %p110, %s111, %s112
    %p116 = pneg %p110
    %p117 = scmp.eq.s32.totalorder %s10, 1
    %p118 = por %p116, %p117
    %p119 = scmp.ne.s32.totalorder %s111, %s114
    %p120 = scmp.eq.s32.totalorder %s10, 0
    %p121 = por %p119, %p120
    %p122 = scmp.ne.s32.totalorder %s111, %s114
    %p123 = scmp.eq.s32.totalorder %s15, 1
    %p124 = por %p122, %p123
    %p125 = scmp.ne.s32.totalorder %s114, %s115
    %p126 = scmp.eq.s32.totalorder %s15, 0
    %p127 = por %p125, %p126
    %p128 = scmp.ne.s32.totalorder %s114, %s115
    %p129 = scmp.eq.s32.totalorder %s16, 1
    %p130 = por %p128, %p129
    %p132 = scmp.ne.s32.totalorder %s115, %s131
    %p133 = scmp.eq.s32.totalorder %s16, 0
    %p134 = por %p132, %p133
    %p135 = scmp.le.s32.totalorder 1, %s10
    %p136 = scmp.lt.s32.totalorder %s10, 3
    %p137 = pnand %p135, %p136
    %p138 = pneg %p137
    // Predicated region
    $region9: #{conv_bn_relu.2} parent=5 // pred_check
      _
    $region10: #{conv_bn_relu.2} parent=5 // pred_check_branch
      %140 = sbr.rel (%p137) target = $region12
    $region11: #{conv_bn_relu.2} parent=5 // pred_region
      %s141 = ssub.s32 %s10, 1
      // Predicated region
      $region13: #{conv_bn_relu.2} parent=11 // pred_check
        %p142 = pneg %p71
      $region14: #{conv_bn_relu.2} parent=11 // pred_check_branch
        %144 = sbr.rel (%p142) target = $region16
      $region15: #{conv_bn_relu.2} parent=11 // pred_region
        _
      $region16: #{conv_bn_relu.2} parent=11 // pred_fallthru
        _
    $region12: #{conv_bn_relu.2} parent=5 // pred_fallthru
      _
    %p145 = scmp.lt.s32.totalorder %s10, 2
    // Predicated region
    $region17: #{conv_bn_relu.2} parent=5 // pred_check
      %p146 = pneg %p145
    $region18: #{conv_bn_relu.2} parent=5 // pred_check_branch
      %148 = sbr.rel (%p146) target = $region20
    $region19: #{conv_bn_relu.2} parent=5 // pred_region
      // Predicated region
      $region21: #{conv_bn_relu.2} parent=19 // pred_check
        %p149 = pneg %p44
      $region22: #{conv_bn_relu.2} parent=19 // pred_check_branch
        %151 = sbr.rel (%p149) target = $region24
      $region23: #{conv_bn_relu.2} parent=19 // pred_region
        %s152 = smul.u32 32, %s18
        %p153 = scmp.lt.s32.totalorder %s17, 1
        %s154 = scalar_select %p153, %s17, 1
        %p155 = scmp.lt.s32.totalorder %s152, 31
        %s156 = scalar_select %p155, %s152, 31
        %s157 = smul.addr %s154, 32
        %s158 = sadd.s32 %s156, %s157
        %s159 = smul.addr %s158, 4
        %s160 = scalar_lea.vmem %s0, %s159
        %s161 = smul.u32 32, %s18
      $region24: #{conv_bn_relu.2} parent=19 // pred_fallthru
        _
    $region20: #{conv_bn_relu.2} parent=5 // pred_fallthru
      _
    %p162 = scmp.le.s32.totalorder 1, %s10
    %p163 = scmp.lt.s32.totalorder %s10, 3
    %p164 = pnand %p162, %p163
    %p165 = pneg %p164
    // Predicated region
    $region25: #{conv_bn_relu.2} parent=5 // pred_check
      _
    $region26: #{conv_bn_relu.2} parent=5 // pred_check_branch
      %167 = sbr.rel (%p164) target = $region28
    $region27: #{conv_bn_relu.2} parent=5 // pred_region
      %s168 = ssub.s32 %s10, 1
      %s169 = smul.u32 32, %s20
      %p170 = scmp.lt.s32.totalorder %s19, 1
      %s171 = scalar_select %p170, %s19, 1
      %p172 = scmp.lt.s32.totalorder %s169, 31
      %s173 = scalar_select %p172, %s169, 31
      %s174 = smul.addr %s171, 32
      %s175 = sadd.s32 %s173, %s174
      %s176 = smul.addr %s175, 4
      %s177 = scalar_lea.vmem %s0, %s176
      %p178 = pneg %p50
      %p179 = pneg %p47
      %p180 = pneg %p71
      %p181 = pneg %p68
      %p182 = pneg %p99
      %p183 = pneg %p96
      %s184 = smul.u32 32, %s20
      %p185 = scmp.lt.s32.totalorder %s19, 1
      %s186 = scalar_select %p185, %s19, 1
      %p187 = scmp.lt.s32.totalorder %s184, 31
      %s188 = scalar_select %p187, %s184, 31
      %s189 = smul.addr %s186, 32
      %s190 = sadd.s32 %s188, %s189
      %s191 = smul.addr %s190, 4
      %s192 = scalar_lea.vmem %s2, %s191
      %p193 = pneg %p127
      %p194 = pneg %p124
      %p195 = scmp.lt.s32.totalorder %s19, 1
      %s196 = scalar_select %p195, %s19, 1
      %p197 = scmp.lt.s32.totalorder %s20, 0
      %s198 = scalar_select %p197, %s20, 0
      %s199 = sadd.s32 %s198, %s196
      %s200 = smul.addr %s199, 2
      %s201 = scalar_lea.vmem %s3, %s200
      %s202 = smul.u32 32, %s20
      %p203 = scmp.lt.s32.totalorder %s19, 1
      %s204 = scalar_select %p203, %s19, 1
      %p205 = scmp.lt.s32.totalorder %s202, 31
      %s206 = scalar_select %p205, %s202, 31
      %s207 = smul.addr %s204, 32
      %s208 = sadd.s32 %s206, %s207
      %s209 = smul.addr %s208, 4
      %s210 = scalar_lea.vmem %s0, %s209
      %s211 = smul.u32 32, %s20
      %s212 = smul.u32 32, %s20
      %p213 = scmp.lt.s32.totalorder %s19, 1
      %s214 = scalar_select %p213, %s19, 1
      %p215 = scmp.lt.s32.totalorder %s212, 31
      %s216 = scalar_select %p215, %s212, 31
      %s217 = smul.addr %s214, 32
      %s218 = sadd.s32 %s216, %s217
      %s219 = smul.addr %s218, 4
      %s220 = scalar_lea.vmem %s2, %s219
      %s221 = smul.u32 32, %s20
      %p222 = scmp.lt.s32.totalorder %s19, 1
      %s223 = scalar_select %p222, %s19, 1
      %p224 = scmp.lt.s32.totalorder %s20, 0
      %s225 = scalar_select %p224, %s20, 0
      %s226 = sadd.s32 %s225, %s223
      %s227 = smul.addr %s226, 2
      %s228 = scalar_lea.vmem %s3, %s227
      %v230 = vld [vmem:[%s210] sm:$0xf]
      %v231 = vld [vmem:[%s210 + $0x4] sm:$0xf]
      %v232 = vld [vmem:[%s210 + $0x8] sm:$0xf]
      %v233 = vld [vmem:[%s210 + $0xc] sm:$0xf]
      %v234 = vld [vmem:[%s210 + $0x10] sm:$0xf]
      %v235 = vld [vmem:[%s210 + $0x14] sm:$0xf]
      %v236 = vld [vmem:[%s210 + $0x18] sm:$0xf]
      %v237 = vld [vmem:[%s210 + $0x1c] sm:$0xf]
      %v238 = vld [vmem:[%s210 + $0x20] sm:$0xf]
      %v239 = vld [vmem:[%s210 + $0x24] sm:$0xf]
      %v240 = vld [vmem:[%s210 + $0x28] sm:$0xf]
      %v241 = vld [vmem:[%s210 + $0x2c] sm:$0xf]
      %v242 = vld [vmem:[%s210 + $0x30] sm:$0xf]
      %v243 = vld [vmem:[%s210 + $0x34] sm:$0xf]
      %v244 = vld [vmem:[%s210 + $0x38] sm:$0xf]
      %v245 = vld [vmem:[%s210 + $0x3c] sm:$0xf]
      %v246 = vld [vmem:[%s210 + $0x40] sm:$0xf]
      %v247 = vld [vmem:[%s210 + $0x44] sm:$0xf]
      %v248 = vld [vmem:[%s210 + $0x48] sm:$0xf]
      %v249 = vld [vmem:[%s210 + $0x4c] sm:$0xf]
      %v250 = vld [vmem:[%s210 + $0x50] sm:$0xf]
      %v251 = vld [vmem:[%s210 + $0x54] sm:$0xf]
      %v252 = vld [vmem:[%s210 + $0x58] sm:$0xf]
      %v253 = vld [vmem:[%s210 + $0x5c] sm:$0xf]
      %v254 = vld [vmem:[%s210 + $0x60] sm:$0xf]
      %v255 = vld [vmem:[%s210 + $0x64] sm:$0xf]
      %v256 = vld [vmem:[%s210 + $0x68] sm:$0xf]
      %v257 = vld [vmem:[%s210 + $0x6c] sm:$0xf]
      %v258 = vld [vmem:[%s210 + $0x70] sm:$0xf]
      %v259 = vld [vmem:[%s210 + $0x74] sm:$0xf]
      %v260 = vld [vmem:[%s210 + $0x78] sm:$0xf]
      %v261 = vld [vmem:[%s210 + $0x7c] sm:$0xf]
      %v262 = vld [vmem:[%s1] sm:$0xf]
      %v263 = vld [vmem:[%s1 + $0x4] sm:$0xf]
      %v264 = vld [vmem:[%s1 + $0x8] sm:$0xf]
      %v265 = vld [vmem:[%s1 + $0xc] sm:$0xf]
      %v266 = vld [vmem:[%s1 + $0x10] sm:$0xf]
      %v267 = vld [vmem:[%s1 + $0x14] sm:$0xf]
      %v268 = vld [vmem:[%s1 + $0x18] sm:$0xf]
      %v269 = vld [vmem:[%s1 + $0x1c] sm:$0xf]
      %v270 = vld [vmem:[%s1 + $0x20] sm:$0xf]
      %v271 = vld [vmem:[%s1 + $0x24] sm:$0xf]
      %v272 = vld [vmem:[%s1 + $0x28] sm:$0xf]
      %v273 = vld [vmem:[%s1 + $0x2c] sm:$0xf]
      %v274 = vld [vmem:[%s1 + $0x30] sm:$0xf]
      %v275 = vld [vmem:[%s1 + $0x34] sm:$0xf]
      %v276 = vld [vmem:[%s1 + $0x38] sm:$0xf]
      %v277 = vld [vmem:[%s1 + $0x3c] sm:$0xf]
      %v310 = vunpack.c.l.b16 %v230
      %v311 = vunpack.c.l.b16 %v231
      %v312 = vunpack.c.l.b16 %v232
      %v313 = vunpack.c.l.b16 %v233
      %v314 = vunpack.c.l.b16 %v234
      %v315 = vunpack.c.l.b16 %v235
      %v316 = vunpack.c.l.b16 %v236
      %v317 = vunpack.c.l.b16 %v237
      %v318 = vunpack.c.l.b16 %v238
      %v319 = vunpack.c.l.b16 %v239
      %v320 = vunpack.c.l.b16 %v240
      %v321 = vunpack.c.l.b16 %v241
      %v322 = vunpack.c.l.b16 %v242
      %v323 = vunpack.c.l.b16 %v243
      %v324 = vunpack.c.l.b16 %v244
      %v325 = vunpack.c.l.b16 %v245
      %v326 = vunpack.c.l.b16 %v246
      %v327 = vunpack.c.l.b16 %v247
      %v328 = vunpack.c.l.b16 %v248
      %v329 = vunpack.c.l.b16 %v249
      %v330 = vunpack.c.l.b16 %v250
      %v331 = vunpack.c.l.b16 %v251
      %v332 = vunpack.c.l.b16 %v252
      %v333 = vunpack.c.l.b16 %v253
      %v334 = vunpack.c.l.b16 %v254
      %v335 = vunpack.c.l.b16 %v255
      %v336 = vunpack.c.l.b16 %v256
      %v337 = vunpack.c.l.b16 %v257
      %v338 = vunpack.c.l.b16 %v258
      %v339 = vunpack.c.l.b16 %v259
      %v340 = vunpack.c.l.b16 %v260
      %v341 = vunpack.c.l.b16 %v261
      %v342 = vpack.c.b16 %v311, %v310
      %v343 = vpack.c.b16 %v313, %v312
      %v344 = vpack.c.b16 %v315, %v314
      %v345 = vpack.c.b16 %v317, %v316
      %v346 = vpack.c.b16 %v319, %v318
      %v347 = vpack.c.b16 %v321, %v320
      %v348 = vpack.c.b16 %v323, %v322
      %v349 = vpack.c.b16 %v325, %v324
      %v350 = vpack.c.b16 %v327, %v326
      %v351 = vpack.c.b16 %v329, %v328
      %v352 = vpack.c.b16 %v331, %v330
      %v353 = vpack.c.b16 %v333, %v332
      %v354 = vpack.c.b16 %v335, %v334
      %v355 = vpack.c.b16 %v337, %v336
      %v356 = vpack.c.b16 %v339, %v338
      %v357 = vpack.c.b16 %v341, %v340
      %v390 = vunpack.c.l.b16 %v262
      %v391 = vunpack.c.l.b16 %v263
      %v392 = vunpack.c.l.b16 %v264
      %v393 = vunpack.c.l.b16 %v265
      %v394 = vunpack.c.l.b16 %v266
      %v395 = vunpack.c.l.b16 %v267
      %v396 = vunpack.c.l.b16 %v268
      %v397 = vunpack.c.l.b16 %v269
      %v398 = vunpack.c.l.b16 %v270
      %v399 = vunpack.c.l.b16 %v271
      %v400 = vunpack.c.l.b16 %v272
      %v401 = vunpack.c.l.b16 %v273
      %v402 = vunpack.c.l.b16 %v274
      %v403 = vunpack.c.l.b16 %v275
      %v404 = vunpack.c.l.b16 %v276
      %v405 = vunpack.c.l.b16 %v277
      %v406 = vpack.c.b16 %v391, %v390
      %v407 = vpack.c.b16 %v393, %v392
      %v408 = vpack.c.b16 %v395, %v394
      %v409 = vpack.c.b16 %v397, %v396
      %v410 = vpack.c.b16 %v399, %v398
      %v411 = vpack.c.b16 %v401, %v400
      %v412 = vpack.c.b16 %v403, %v402
      %v413 = vpack.c.b16 %v405, %v404
      %422 = vmatprep.subr.bf16.mxu0 0
      %423 = vmatpush1.bf16.msra.mxu0 %v413
      %424 = vmatprep.subr.bf16.mxu0 0
      %425 = vmatpush1.bf16.msra.mxu0 %v412
      %426 = vmatprep.subr.bf16.mxu0 0
      %427 = vmatpush1.bf16.msra.mxu0 %v411
      %428 = vmatprep.subr.bf16.mxu0 0
      %429 = vmatpush1.bf16.msra.mxu0 %v410
      %430 = vmatprep.subr.bf16.mxu0 0
      %431 = vmatpush1.bf16.msra.mxu0 %v409
      %432 = vmatprep.subr.bf16.mxu0 0
      %433 = vmatpush1.bf16.msra.mxu0 %v408
      %434 = vmatprep.subr.bf16.mxu0 0
      %435 = vmatpush1.bf16.msra.mxu0 %v407
      %436 = vmatprep.subr.bf16.mxu0 0
      %437 = vmatpush1.bf16.msra.mxu0 %v406
      %438 = vmatprep.subr.bf16.mxu0 0
      %439 = vmatpush2.bf16.msra.mxu0 0
      %440 = vmatprep.subr.bf16.mxu0 0
      %441 = vmatpush2.bf16.msra.mxu0 0
      %442 = vmatprep.subr.bf16.mxu0 0
      %443 = vmatpush2.bf16.msra.mxu0 0
      %444 = vmatprep.subr.bf16.mxu0 0
      %445 = vmatpush2.bf16.msra.mxu0 0
      %446 = vmatprep.subr.bf16.mxu0 0
      %447 = vmatpush2.bf16.msra.mxu0 0
      %448 = vmatprep.subr.bf16.mxu0 0
      %449 = vmatpush2.bf16.msra.mxu0 0
      %450 = vmatprep.subr.bf16.mxu0 0
      %451 = vmatpush2.bf16.msra.mxu0 0
      %452 = vmatprep.subr.bf16.mxu0 0
      %453 = vmatpush2.bf16.msra.mxu0 0
      %454 = vmatprep.mubr.bf16.mxu0 0
      %455 = vmatmul.mubr.bf16.gmra.mxu0 %v342
      %v456 = vpop.f32.mrf.mxu0
      %v457 = vadd.f32 0.0, %v456
      %v458 = vpop.f32.mrf.mxu0
      %v459 = vpop.f32.mrf.mxu0
      %v460 = vadd.f32 0.0, %v459
      %v461 = vpop.f32.mrf.mxu0
      %462 = vmatprep.mubr.bf16.mxu0 0
      %463 = vmatmul.mubr.bf16.gmra.mxu0 %v343
      %v464 = vpop.f32.mrf.mxu0
      %v465 = vadd.f32 0.0, %v464
      %v466 = vpop.f32.mrf.mxu0
      %v467 = vpop.f32.mrf.mxu0
      %v468 = vadd.f32 0.0, %v467
      %v469 = vpop.f32.mrf.mxu0
      %470 = vmatprep.mubr.bf16.mxu0 0
      %471 = vmatmul.mubr.bf16.gmra.mxu0 %v344
      %v472 = vpop.f32.mrf.mxu0
      %v473 = vadd.f32 0.0, %v472
      %v474 = vpop.f32.mrf.mxu0
      %v475 = vpop.f32.mrf.mxu0
      %v476 = vadd.f32 0.0, %v475
      %v477 = vpop.f32.mrf.mxu0
      %478 = vmatprep.mubr.bf16.mxu0 0
      %479 = vmatmul.mubr.bf16.gmra.mxu0 %v345
      %v480 = vpop.f32.mrf.mxu0
      %v481 = vadd.f32 0.0, %v480
      %v482 = vpop.f32.mrf.mxu0
      %v483 = vpop.f32.mrf.mxu0
      %v484 = vadd.f32 0.0, %v483
      %v485 = vpop.f32.mrf.mxu0
      %486 = vmatprep.mubr.bf16.mxu0 0
      %487 = vmatmul.mubr.bf16.gmra.mxu0 %v346
      %v488 = vpop.f32.mrf.mxu0
      %v489 = vadd.f32 0.0, %v488
      %v490 = vpop.f32.mrf.mxu0
      %v491 = vpop.f32.mrf.mxu0
      %v492 = vadd.f32 0.0, %v491
      %v493 = vpop.f32.mrf.mxu0
      %494 = vmatprep.mubr.bf16.mxu0 0
      %495 = vmatmul.mubr.bf16.gmra.mxu0 %v347
      %v496 = vpop.f32.mrf.mxu0
      %v497 = vadd.f32 0.0, %v496
      %v498 = vpop.f32.mrf.mxu0
      %v499 = vpop.f32.mrf.mxu0
      %v500 = vadd.f32 0.0, %v499
      %v501 = vpop.f32.mrf.mxu0
      %502 = vmatprep.mubr.bf16.mxu0 0
      %503 = vmatmul.mubr.bf16.gmra.mxu0 %v348
      %v504 = vpop.f32.mrf.mxu0
      %v505 = vadd.f32 0.0, %v504
      %v506 = vpop.f32.mrf.mxu0
      %v507 = vpop.f32.mrf.mxu0
      %v508 = vadd.f32 0.0, %v507
      %v509 = vpop.f32.mrf.mxu0
      %510 = vmatprep.mubr.bf16.mxu0 0
      %511 = vmatmul.mubr.bf16.gmra.mxu0 %v349
      %v512 = vpop.f32.mrf.mxu0
      %v513 = vadd.f32 0.0, %v512
      %v514 = vpop.f32.mrf.mxu0
      %v515 = vpop.f32.mrf.mxu0
      %v516 = vadd.f32 0.0, %v515
      %v517 = vpop.f32.mrf.mxu0
      %518 = vmatprep.mubr.bf16.mxu0 0
      %519 = vmatmul.mubr.bf16.gmra.mxu0 %v350
      %v520 = vpop.f32.mrf.mxu0
      %v521 = vadd.f32 0.0, %v520
      %v522 = vpop.f32.mrf.mxu0
      %v523 = vpop.f32.mrf.mxu0
      %v524 = vadd.f32 0.0, %v523
      %v525 = vpop.f32.mrf.mxu0
      %526 = vmatprep.mubr.bf16.mxu0 0
      %527 = vmatmul.mubr.bf16.gmra.mxu0 %v351
      %v528 = vpop.f32.mrf.mxu0
      %v529 = vadd.f32 0.0, %v528
      %v530 = vpop.f32.mrf.mxu0
      %v531 = vpop.f32.mrf.mxu0
      %v532 = vadd.f32 0.0, %v531
      %v533 = vpop.f32.mrf.mxu0
      %534 = vmatprep.mubr.bf16.mxu0 0
      %535 = vmatmul.mubr.bf16.gmra.mxu0 %v352
      %v536 = vpop.f32.mrf.mxu0
      %v537 = vadd.f32 0.0, %v536
      %v538 = vpop.f32.mrf.mxu0
      %v539 = vpop.f32.mrf.mxu0
      %v540 = vadd.f32 0.0, %v539
      %v541 = vpop.f32.mrf.mxu0
      %542 = vmatprep.mubr.bf16.mxu0 0
      %543 = vmatmul.mubr.bf16.gmra.mxu0 %v353
      %v544 = vpop.f32.mrf.mxu0
      %v545 = vadd.f32 0.0, %v544
      %v546 = vpop.f32.mrf.mxu0
      %v547 = vpop.f32.mrf.mxu0
      %v548 = vadd.f32 0.0, %v547
      %v549 = vpop.f32.mrf.mxu0
      %550 = vmatprep.mubr.bf16.mxu0 0
      %551 = vmatmul.mubr.bf16.gmra.mxu0 %v354
      %v552 = vpop.f32.mrf.mxu0
      %v553 = vadd.f32 0.0, %v552
      %v554 = vpop.f32.mrf.mxu0
      %v555 = vpop.f32.mrf.mxu0
      %v556 = vadd.f32 0.0, %v555
      %v557 = vpop.f32.mrf.mxu0
      %558 = vmatprep.mubr.bf16.mxu0 0
      %559 = vmatmul.mubr.bf16.gmra.mxu0 %v355
      %v560 = vpop.f32.mrf.mxu0
      %v561 = vadd.f32 0.0, %v560
      %v562 = vpop.f32.mrf.mxu0
      %v563 = vpop.f32.mrf.mxu0
      %v564 = vadd.f32 0.0, %v563
      %v565 = vpop.f32.mrf.mxu0
      %566 = vmatprep.mubr.bf16.mxu0 0
      %567 = vmatmul.mubr.bf16.gmra.mxu0 %v356
      %v568 = vpop.f32.mrf.mxu0
      %v569 = vadd.f32 0.0, %v568
      %v570 = vpop.f32.mrf.mxu0
      %v571 = vpop.f32.mrf.mxu0
      %v572 = vadd.f32 0.0, %v571
      %v573 = vpop.f32.mrf.mxu0
      %574 = vmatprep.mubr.bf16.mxu0 0
      %575 = vmatmul.mubr.bf16.gmra.mxu0 %v357
      %v576 = vpop.f32.mrf.mxu0
      %v577 = vadd.f32 0.0, %v576
      %v578 = vpop.f32.mrf.mxu0
      %v579 = vpop.f32.mrf.mxu0
      %v580 = vadd.f32 0.0, %v579
      %v581 = vpop.f32.mrf.mxu0
      %582 = vdwg.mxu0
      %v583 = vadd.f32 %v457, %v460
      %v584 = vadd.f32 %v583, %v465
      %v585 = vadd.f32 %v584, %v468
      %v586 = vadd.f32 %v585, %v473
      %v587 = vadd.f32 %v586, %v476
      %v588 = vadd.f32 %v587, %v481
      %v589 = vadd.f32 %v588, %v484
      %v590 = vadd.f32 %v589, %v489
      %v591 = vadd.f32 %v590, %v492
      %v592 = vadd.f32 %v591, %v497
      %v593 = vadd.f32 %v592, %v500
      %v594 = vadd.f32 %v593, %v505
      %v595 = vadd.f32 %v594, %v508
      %v596 = vadd.f32 %v595, %v513
      %v597 = vadd.f32 %v596, %v516
      %v598 = vadd.f32 %v597, %v521
      %v599 = vadd.f32 %v598, %v524
      %v600 = vadd.f32 %v599, %v529
      %v601 = vadd.f32 %v600, %v532
      %v602 = vadd.f32 %v601, %v537
      %v603 = vadd.f32 %v602, %v540
      %v604 = vadd.f32 %v603, %v545
      %v605 = vadd.f32 %v604, %v548
      %v606 = vadd.f32 %v605, %v553
      %v607 = vadd.f32 %v606, %v556
      %v608 = vadd.f32 %v607, %v561
      %v609 = vadd.f32 %v608, %v564
      %v610 = vadd.f32 %v609, %v569
      %v611 = vadd.f32 %v610, %v572
      %v612 = vadd.f32 %v611, %v577
      %v613 = vadd.f32 %v612, %v580
      %v614 = vrot.slane %v613, 4
      %v615 = vadd.f32 %v613, %v614
      %v616 = vrot.slane %v615, 2
      %v617 = vadd.f32 %v615, %v616
      %v618 = vrot.slane %v617, 1
      %v619 = vadd.f32 %v617, %v618
      %620 = vst [vmem:[%s228] sm:$0x1] %v619
      %v621 = vmul.f32 %v457, %v457
      %v622 = vmul.f32 %v460, %v460
      %v623 = vmul.f32 %v465, %v465
      %v624 = vmul.f32 %v468, %v468
      %v625 = vmul.f32 %v473, %v473
      %v626 = vmul.f32 %v476, %v476
      %v627 = vmul.f32 %v481, %v481
      %v628 = vmul.f32 %v484, %v484
      %v629 = vmul.f32 %v489, %v489
      %v630 = vmul.f32 %v492, %v492
      %v631 = vmul.f32 %v497, %v497
      %v632 = vmul.f32 %v500, %v500
      %v633 = vmul.f32 %v505, %v505
      %v634 = vmul.f32 %v508, %v508
      %v635 = vmul.f32 %v513, %v513
      %v636 = vmul.f32 %v516, %v516
      %v637 = vmul.f32 %v521, %v521
      %v638 = vmul.f32 %v524, %v524
      %v639 = vmul.f32 %v529, %v529
      %v640 = vmul.f32 %v532, %v532
      %v641 = vmul.f32 %v537, %v537
      %v642 = vmul.f32 %v540, %v540
      %v643 = vmul.f32 %v545, %v545
      %v644 = vmul.f32 %v548, %v548
      %v645 = vmul.f32 %v553, %v553
      %v646 = vmul.f32 %v556, %v556
      %v647 = vmul.f32 %v561, %v561
      %v648 = vmul.f32 %v564, %v564
      %v649 = vmul.f32 %v569, %v569
      %v650 = vmul.f32 %v572, %v572
      %v651 = vmul.f32 %v577, %v577
      %v652 = vmul.f32 %v580, %v580
      %v653 = vadd.f32 %v621, %v622
      %v654 = vadd.f32 %v653, %v623
      %v655 = vadd.f32 %v654, %v624
      %v656 = vadd.f32 %v655, %v625
      %v657 = vadd.f32 %v656, %v626
      %v658 = vadd.f32 %v657, %v627
      %v659 = vadd.f32 %v658, %v628
      %v660 = vadd.f32 %v659, %v629
      %v661 = vadd.f32 %v660, %v630
      %v662 = vadd.f32 %v661, %v631
      %v663 = vadd.f32 %v662, %v632
      %v664 = vadd.f32 %v663, %v633
      %v665 = vadd.f32 %v664, %v634
      %v666 = vadd.f32 %v665, %v635
      %v667 = vadd.f32 %v666, %v636
      %v668 = vadd.f32 %v667, %v637
      %v669 = vadd.f32 %v668, %v638
      %v670 = vadd.f32 %v669, %v639
      %v671 = vadd.f32 %v670, %v640
      %v672 = vadd.f32 %v671, %v641
      %v673 = vadd.f32 %v672, %v642
      %v674 = vadd.f32 %v673, %v643
      %v675 = vadd.f32 %v674, %v644
      %v676 = vadd.f32 %v675, %v645
      %v677 = vadd.f32 %v676, %v646
      %v678 = vadd.f32 %v677, %v647
      %v679 = vadd.f32 %v678, %v648
      %v680 = vadd.f32 %v679, %v649
      %v681 = vadd.f32 %v680, %v650
      %v682 = vadd.f32 %v681, %v651
      %v683 = vadd.f32 %v682, %v652
      %v684 = vrot.slane %v683, 4
      %v685 = vadd.f32 %v683, %v684
      %v686 = vrot.slane %v685, 2
      %v687 = vadd.f32 %v685, %v686
      %v688 = vrot.slane %v687, 1
      %v689 = vadd.f32 %v687, %v688
      %690 = vst [vmem:[%s228 + $0x1] sm:$0x1] %v689
      %v691 = vpack.c.bf16 %v460, %v457
      %v692 = vpack.c.bf16 %v468, %v465
      %v693 = vpack.c.bf16 %v476, %v473
      %v694 = vpack.c.bf16 %v484, %v481
      %v695 = vpack.c.bf16 %v492, %v489
      %v696 = vpack.c.bf16 %v500, %v497
      %v697 = vpack.c.bf16 %v508, %v505
      %v698 = vpack.c.bf16 %v516, %v513
      %v699 = vpack.c.bf16 %v524, %v521
      %v700 = vpack.c.bf16 %v532, %v529
      %v701 = vpack.c.bf16 %v540, %v537
      %v702 = vpack.c.bf16 %v548, %v545
      %v703 = vpack.c.bf16 %v556, %v553
      %v704 = vpack.c.bf16 %v564, %v561
      %v705 = vpack.c.bf16 %v572, %v569
      %v706 = vpack.c.bf16 %v580, %v577
      %v723 = vunpack.c.l.b16 %v691
      %v724 = vunpack.c.h.b16 %v691
      %v725 = vunpack.c.l.b16 %v692
      %v726 = vunpack.c.h.b16 %v692
      %v727 = vunpack.c.l.b16 %v693
      %v728 = vunpack.c.h.b16 %v693
      %v729 = vunpack.c.l.b16 %v694
      %v730 = vunpack.c.h.b16 %v694
      %v731 = vunpack.c.l.b16 %v695
      %v732 = vunpack.c.h.b16 %v695
      %v733 = vunpack.c.l.b16 %v696
      %v734 = vunpack.c.h.b16 %v696
      %v735 = vunpack.c.l.b16 %v697
      %v736 = vunpack.c.h.b16 %v697
      %v737 = vunpack.c.l.b16 %v698
      %v738 = vunpack.c.h.b16 %v698
      %v739 = vunpack.c.l.b16 %v699
      %v740 = vunpack.c.h.b16 %v699
      %v741 = vunpack.c.l.b16 %v700
      %v742 = vunpack.c.h.b16 %v700
      %v743 = vunpack.c.l.b16 %v701
      %v744 = vunpack.c.h.b16 %v701
      %v745 = vunpack.c.l.b16 %v702
      %v746 = vunpack.c.h.b16 %v702
      %v747 = vunpack.c.l.b16 %v703
      %v748 = vunpack.c.h.b16 %v703
      %v749 = vunpack.c.l.b16 %v704
      %v750 = vunpack.c.h.b16 %v704
      %v751 = vunpack.c.l.b16 %v705
      %v752 = vunpack.c.h.b16 %v705
      %v753 = vunpack.c.l.b16 %v706
      %v754 = vunpack.c.h.b16 %v706
      %v755 = vpack.c.b16 %v723, %v723
      %v756 = vpack.c.b16 %v724, %v724
      %v757 = vpack.c.b16 %v725, %v725
      %v758 = vpack.c.b16 %v726, %v726
      %v759 = vpack.c.b16 %v727, %v727
      %v760 = vpack.c.b16 %v728, %v728
      %v761 = vpack.c.b16 %v729, %v729
      %v762 = vpack.c.b16 %v730, %v730
      %v763 = vpack.c.b16 %v731, %v731
      %v764 = vpack.c.b16 %v732, %v732
      %v765 = vpack.c.b16 %v733, %v733
      %v766 = vpack.c.b16 %v734, %v734
      %v767 = vpack.c.b16 %v735, %v735
      %v768 = vpack.c.b16 %v736, %v736
      %v769 = vpack.c.b16 %v737, %v737
      %v770 = vpack.c.b16 %v738, %v738
      %v771 = vpack.c.b16 %v739, %v739
      %v772 = vpack.c.b16 %v740, %v740
      %v773 = vpack.c.b16 %v741, %v741
      %v774 = vpack.c.b16 %v742, %v742
      %v775 = vpack.c.b16 %v743, %v743
      %v776 = vpack.c.b16 %v744, %v744
      %v777 = vpack.c.b16 %v745, %v745
      %v778 = vpack.c.b16 %v746, %v746
      %v779 = vpack.c.b16 %v747, %v747
      %v780 = vpack.c.b16 %v748, %v748
      %v781 = vpack.c.b16 %v749, %v749
      %v782 = vpack.c.b16 %v750, %v750
      %v783 = vpack.c.b16 %v751, %v751
      %v784 = vpack.c.b16 %v752, %v752
      %v785 = vpack.c.b16 %v753, %v753
      %v786 = vpack.c.b16 %v754, %v754
      %819 = vst [vmem:[%s220] sm:$0xf] %v755
      %820 = vst [vmem:[%s220 + $0x4] sm:$0xf] %v756
      %821 = vst [vmem:[%s220 + $0x8] sm:$0xf] %v757
      %822 = vst [vmem:[%s220 + $0xc] sm:$0xf] %v758
      %823 = vst [vmem:[%s220 + $0x10] sm:$0xf] %v759
      %824 = vst [vmem:[%s220 + $0x14] sm:$0xf] %v760
      %825 = vst [vmem:[%s220 + $0x18] sm:$0xf] %v761
      %826 = vst [vmem:[%s220 + $0x1c] sm:$0xf] %v762
      %827 = vst [vmem:[%s220 + $0x20] sm:$0xf] %v763
      %828 = vst [vmem:[%s220 + $0x24] sm:$0xf] %v764
      %829 = vst [vmem:[%s220 + $0x28] sm:$0xf] %v765
      %830 = vst [vmem:[%s220 + $0x2c] sm:$0xf] %v766
      %831 = vst [vmem:[%s220 + $0x30] sm:$0xf] %v767
      %832 = vst [vmem:[%s220 + $0x34] sm:$0xf] %v768
      %833 = vst [vmem:[%s220 + $0x38] sm:$0xf] %v769
      %834 = vst [vmem:[%s220 + $0x3c] sm:$0xf] %v770
      %835 = vst [vmem:[%s220 + $0x40] sm:$0xf] %v771
      %836 = vst [vmem:[%s220 + $0x44] sm:$0xf] %v772
      %837 = vst [vmem:[%s220 + $0x48] sm:$0xf] %v773
      %838 = vst [vmem:[%s220 + $0x4c] sm:$0xf] %v774
      %839 = vst [vmem:[%s220 + $0x50] sm:$0xf] %v775
      %840 = vst [vmem:[%s220 + $0x54] sm:$0xf] %v776
      %841 = vst [vmem:[%s220 + $0x58] sm:$0xf] %v777
      %842 = vst [vmem:[%s220 + $0x5c] sm:$0xf] %v778
      %843 = vst [vmem:[%s220 + $0x60] sm:$0xf] %v779
      %844 = vst [vmem:[%s220 + $0x64] sm:$0xf] %v780
      %845 = vst [vmem:[%s220 + $0x68] sm:$0xf] %v781
      %846 = vst [vmem:[%s220 + $0x6c] sm:$0xf] %v782
      %847 = vst [vmem:[%s220 + $0x70] sm:$0xf] %v783
      %848 = vst [vmem:[%s220 + $0x74] sm:$0xf] %v784
      %849 = vst [vmem:[%s220 + $0x78] sm:$0xf] %v785
      %850 = vst [vmem:[%s220 + $0x7c] sm:$0xf] %v786
      %s851 = smul.u32 32, %s20
      %p852 = scmp.lt.s32.totalorder %s19, 1
      %s853 = scalar_select %p852, %s19, 1
      %p854 = scmp.lt.s32.totalorder %s851, 31
      %s855 = scalar_select %p854, %s851, 31
      %s856 = smul.addr %s853, 32
      %s857 = sadd.s32 %s855, %s856
      %s858 = smul.addr %s857, 4
      %s859 = scalar_lea.vmem %s2, %s858
      %p860 = scmp.lt.s32.totalorder %s19, 1
      %s861 = scalar_select %p860, %s19, 1
      %p862 = scmp.lt.s32.totalorder %s20, 0
      %s863 = scalar_select %p862, %s20, 0
      %s864 = sadd.s32 %s863, %s861
      %s865 = smul.addr %s864, 2
      %s866 = scalar_lea.vmem %s3, %s865
      // Predicated region
      $region29: #{conv_bn_relu.2} parent=27 // pred_check
        %p867 = pneg %p96
      $region30: #{conv_bn_relu.2} parent=27 // pred_check_branch
        %869 = sbr.rel (%p867) target = $region32
      $region31: #{conv_bn_relu.2} parent=27 // pred_region
        %s870 = smul.u32 32, %s20
      $region32: #{conv_bn_relu.2} parent=27 // pred_fallthru
        _
      // Predicated region
      $region33: #{conv_bn_relu.2} parent=27 // pred_check
        %p871 = pneg %p124
      $region34: #{conv_bn_relu.2} parent=27 // pred_check_branch
        %873 = sbr.rel (%p871) target = $region36
      $region35: #{conv_bn_relu.2} parent=27 // pred_region
        _
      $region36: #{conv_bn_relu.2} parent=27 // pred_fallthru
        _
    $region28: #{conv_bn_relu.2} parent=5 // pred_fallthru
      _
    %p874 = scmp.le.s32.totalorder 2, %s10
    // Predicated region
    $region37: #{conv_bn_relu.2} parent=5 // pred_check
      %p875 = pneg %p874
    $region38: #{conv_bn_relu.2} parent=5 // pred_check_branch
      %877 = sbr.rel (%p875) target = $region40
    $region39: #{conv_bn_relu.2} parent=5 // pred_region
      %s878 = ssub.s32 %s10, 2
      // Predicated region
      $region41: #{conv_bn_relu.2} parent=39 // pred_check
        %p879 = pneg %p102
      $region42: #{conv_bn_relu.2} parent=39 // pred_check_branch
        %881 = sbr.rel (%p879) target = $region44
      $region43: #{conv_bn_relu.2} parent=39 // pred_region
        %s882 = smul.u32 32, %s22
        %p883 = scmp.lt.s32.totalorder %s21, 1
        %s884 = scalar_select %p883, %s21, 1
        %p885 = scmp.lt.s32.totalorder %s882, 31
        %s886 = scalar_select %p885, %s882, 31
        %s887 = smul.addr %s884, 32
        %s888 = sadd.s32 %s886, %s887
        %s889 = smul.addr %s888, 4
        %s890 = scalar_lea.vmem %s2, %s889
      $region44: #{conv_bn_relu.2} parent=39 // pred_fallthru
        _
      // Predicated region
      $region45: #{conv_bn_relu.2} parent=39 // pred_check
        %p891 = pneg %p130
      $region46: #{conv_bn_relu.2} parent=39 // pred_check_branch
        %893 = sbr.rel (%p891) target = $region48
      $region47: #{conv_bn_relu.2} parent=39 // pred_region
        %p894 = scmp.lt.s32.totalorder %s21, 1
        %s895 = scalar_select %p894, %s21, 1
        %p896 = scmp.lt.s32.totalorder %s22, 0
        %s897 = scalar_select %p896, %s22, 0
        %s898 = sadd.s32 %s897, %s895
        %s899 = smul.addr %s898, 2
        %s900 = scalar_lea.vmem %s3, %s899
      $region48: #{conv_bn_relu.2} parent=39 // pred_fallthru
        _
    $region40: #{conv_bn_relu.2} parent=5 // pred_fallthru
      _
  $region6: #{conv_bn_relu.2} parent=0 // loop_footer
    %s14 = sadd.s32 1, %s10
  $region7: #{conv_bn_relu.2} parent=0 // loop_footer_branch
    %9 = sbr.rel target = $region3
  $region8: #{conv_bn_relu.2} parent=0 // loop_exit
    _

</llo_original>
